<compile_context>
chip_gen: v6e
topology: v6e:2x2x1
jax: 0.10.0
libtpu: 0.0.40
codegen_flags: <defaults>
</compile_context>

<pallas_src>
import functools

import jax
import jax.numpy as jnp
import numpy as np
from jax.experimental import pallas as pl
from jax.experimental.pallas import tpu as pltpu


# ------------------------------ Pallas kernel ------------------------------ #

def _make_decoder_seq_kernel(n_layers, hidden_dim, n_steps, unroll_time):
    """Fused decoder: T timesteps x (n_layers LSTM cells + fc_out), weights and
    recurrent state VMEM-resident for the whole call."""
    H = hidden_dim
    L = n_layers

    def kernel(*refs):
        # ----- inputs -----
        x_seq_ref = refs[0]                    # (T, B, in0)
        h_ref = refs[1]                        # (L, B, H)  initial hidden
        c_ref = refs[2]                        # (L, B, H)  initial cell
        w_ih_refs = refs[3:3 + L]              # (in_l, 4H); i/f/o cols pre-scaled 0.5
        w_hh_refs = refs[3 + L:3 + 2 * L]      # (H,   4H); i/f/o cols pre-scaled 0.5
        b_ref = refs[3 + 2 * L]                # (L, 1, 4H); b_ih+b_hh, pre-scaled
        act_scale_ref = refs[4 + 2 * L]        # (1, 4H): 0.5 on i/f/o lanes, 1 on g
        act_shift_ref = refs[5 + 2 * L]        # (1, 4H): 0.5 on i/f/o lanes, 0 on g
        w_fc_ref = refs[6 + 2 * L]             # (H, O_pad), 128-lane dense
        b_fc_ref = refs[7 + 2 * L]             # (1, O_pad)
        # ----- outputs -----
        pred_ref = refs[8 + 2 * L]             # (T, B, O_pad)
        h_out_ref = refs[9 + 2 * L]            # (L, B, H)  (aliased with input 1)
        c_out_ref = refs[10 + 2 * L]           # (L, B, H)  (aliased with input 2)

        B = h_ref.shape[1]

        # Recurrent state lives in the output VMEM tiles across all timesteps;
        # HBM writeback happens once, after the kernel.
        h_out_ref[...] = h_ref[...]
        c_out_ref[...] = c_ref[...]

        # Hoisted broadcasts (JAX does not CSE broadcast_in_dim inside loops).
        act_scale = jnp.broadcast_to(act_scale_ref[...], (B, 4 * H))
        act_shift = jnp.broadcast_to(act_shift_ref[...], (B, 4 * H))
        b_fc = jnp.broadcast_to(b_fc_ref[...], (B, b_fc_ref.shape[1]))
        b_l = [jnp.broadcast_to(b_ref[l], (B, 4 * H)) for l in range(L)]

        @pl.loop(0, n_steps, unroll=unroll_time)
        def _(t):
            x = x_seq_ref[t]                   # dropout(input) == identity (inference)
            for l in range(L):                 # static unroll over layers
                h_prev = h_out_ref[l]
                c_prev = c_out_ref[l]
                # PyTorch gate order i, f, g, o.  i/f/o columns of w/b are
                # pre-scaled by 0.5 so a single tanh recovers the sigmoids.
                gates = (
                    jnp.dot(x, w_ih_refs[l][...],
                            preferred_element_type=jnp.float32)
                    + jnp.dot(h_prev, w_hh_refs[l][...],
                              preferred_element_type=jnp.float32)
                    + b_l[l]
                )                              # (B, 4H)
                tnh = jnp.tanh(gates)          # ONE EUP pass over the full gate vreg
                act = tnh * act_scale + act_shift   # sigmoid(z) = 0.5*tanh(z/2) + 0.5
                i_g = act[:, 0 * H:1 * H]
                f_g = act[:, 1 * H:2 * H]
                g_g = act[:, 2 * H:3 * H]
                o_g = act[:, 3 * H:4 * H]
                c_new = f_g * c_prev + i_g * g_g
                h_new = o_g * jnp.tanh(c_new)
                h_out_ref[l] = h_new
                c_out_ref[l] = c_new
                x = h_new                      # inter-layer dropout = identity

            # prediction = fc_out(top-layer h); O_pad is 128-lane dense.
            pred_ref[t] = (
                jnp.dot(x, w_fc_ref[...], preferred_element_type=jnp.float32)
                + b_fc
            )

    return kernel


# -------------------------------- wrappers ---------------------------------- #

def _decoder_seq_pallas(x_seq, hidden, cell, params):
    T, B, _ = x_seq.shape
    L, _, H = hidden.shape
    O_pad = params["w_fc_t"].shape[1]

    operands = [
        x_seq, hidden, cell,
        *params["w_ih_t"], *params["w_hh_t"],
        params["b"], params["act_scale"], params["act_shift"],
        params["w_fc_t"], params["b_fc"],
    ]
    vmem_spec = pl.BlockSpec(memory_space=pltpu.MemorySpace.VMEM)

    kernel = _make_decoder_seq_kernel(L, H, T, unroll_time=(T <= 8))
    pred_seq, h_out, c_out = pl.pallas_call(
        kernel,
        out_shape=[
            jax.ShapeDtypeStruct((T, B, O_pad), jnp.float32),
            jax.ShapeDtypeStruct((L, B, H), jnp.float32),
            jax.ShapeDtypeStruct((L, B, H), jnp.float32),
        ],
        in_specs=[vmem_spec] * len(operands),
        out_specs=[vmem_spec] * 3,
        # hidden/cell update in place in HBM when the caller donates them.
        input_output_aliases={1: 1, 2: 2},
    )(*operands)
    return pred_seq, h_out, c_out


@functools.partial(jax.jit, static_argnames=("n_layers", "output_dim"))
def decoder_forward(inp, hidden, cell, params, n_layers, output_dim):
    """Decoder.forward with attention=None (inference).  Single timestep.

    inp: (B, output_dim); hidden/cell: (n_layers, B, hidden_dim)
    returns (prediction, hidden, cell, alphas=None)
    """
    assert hidden.shape[0] == n_layers
    pred_seq, h_out, c_out = _decoder_seq_pallas(inp[None], hidden, cell, params)
    prediction = pred_seq[0, :, :output_dim]
    return prediction, h_out, c_out, None     # attention is None => alphas is None


@functools.partial(jax.jit, static_argnames=("n_layers", "output_dim"))
def decoder_forward_seq(x_seq, hidden, cell, params, n_layers, output_dim):
    """T teacher-forced decoder steps fused into ONE kernel launch
    (== T sequential Decoder.forward calls with the given inputs)."""
    assert hidden.shape[0] == n_layers
    pred_seq, h_out, c_out = _decoder_seq_pallas(x_seq, hidden, cell, params)
    return pred_seq[:, :, :output_dim], h_out, c_out, None


# --------------------------- parameter conversion ---------------------------- #

def _round_up(x, m):
    return (x + m - 1) // m * m


def build_kernel_params(raw, hidden_dim, output_dim):
    """Convert raw PyTorch-layout LSTM/Linear params into the fused-kernel layout.

    raw: w_ih[l] (4H, in_l), w_hh[l] (4H, H), b_ih[l] (4H,), b_hh[l] (4H,),
         w_fc (O, H), b_fc (O,)   -- PyTorch gate order i, f, g, o.
    """
    H = hidden_dim
    L = len(raw["w_ih"])
    # 0.5 pre-scale on sigmoid gates (i, f, o) for the sigmoid-via-tanh identity.
    col_scale = jnp.concatenate([
        jnp.full((H,), 0.5), jnp.full((H,), 0.5),
        jnp.ones((H,)), jnp.full((H,), 0.5)]).astype(jnp.float32)

    w_ih_t, w_hh_t, b_rows = [], [], []
    for l in range(L):
        w_ih_t.append((raw["w_ih"][l].T * col_scale[None, :]).astype(jnp.float32))
        w_hh_t.append((raw["w_hh"][l].T * col_scale[None, :]).astype(jnp.float32))
        b_rows.append(((raw["b_ih"][l] + raw["b_hh"][l]) * col_scale)
                      .reshape(1, 4 * H).astype(jnp.float32))

    act_scale = col_scale.reshape(1, 4 * H)          # post-tanh multiplier
    act_shift = jnp.concatenate([
        jnp.full((H,), 0.5), jnp.full((H,), 0.5),
        jnp.zeros((H,)), jnp.full((H,), 0.5)]).astype(jnp.float32).reshape(1, 4 * H)

    # fc_out weight/bias zero-padded to a 128-lane-dense output tile.
    # TODO(synk): for a real vocabulary, tile O_pad against VMEM (v7x: 64 MiB).
    O_pad = _round_up(max(output_dim, 128), 128)
    w_fc_t = jnp.zeros((H, O_pad), jnp.float32).at[:, :output_dim].set(raw["w_fc"].T)
    b_fc = jnp.zeros((1, O_pad), jnp.float32).at[0, :output_dim].set(raw["b_fc"])

    return {
        "w_ih_t": w_ih_t, "w_hh_t": w_hh_t, "b": jnp.stack(b_rows, 0),
        "act_scale": act_scale, "act_shift": act_shift,
        "w_fc_t": w_fc_t, "b_fc": b_fc,
    }


# --------------------------- pure-JAX reference ------------------------------ #

def decoder_forward_ref(x_seq, hidden, cell, raw, output_dim):
    """PyTorch-semantics reference built directly from the RAW weights."""
    L, _, H = hidden.shape
    h = [hidden[l] for l in range(L)]
    c = [cell[l] for l in range(L)]
    preds = []
    for t in range(x_seq.shape[0]):
        x = x_seq[t]
        for l in range(L):
            gates = (x @ raw["w_ih"][l].T + h[l] @ raw["w_hh"][l].T
                     + raw["b_ih"][l] + raw["b_hh"][l])
            i_g = jax.nn.sigmoid(gates[:, 0 * H:1 * H])
            f_g = jax.nn.sigmoid(gates[:, 1 * H:2 * H])
            g_g = jnp.tanh(gates[:, 2 * H:3 * H])
            o_g = jax.nn.sigmoid(gates[:, 3 * H:4 * H])
            c[l] = f_g * c[l] + i_g * g_g
            h[l] = o_g * jnp.tanh(c[l])
            x = h[l]
        preds.append(x @ raw["w_fc"].T + raw["b_fc"])
    return jnp.stack(preds, 0), jnp.stack(h, 0), jnp.stack(c, 0)


# ----------------------------------- main ------------------------------------ #

if __name__ == "__main__":
    batch = 8
    output_dim = 16     # decoder vocab size == LSTM input size (attention=None)
    hidden_dim = 32     # 4H = 128 -> the gate tile is exactly one (8,128) vreg
    n_layers = 2
    n_steps = 4         # teacher-forced decode steps fused per launch

    key = jax.random.PRNGKey(0)
    ks = jax.random.split(key, 4 * n_layers + 5)

    def _init(k, shape, scale=0.1):
        return (scale * jax.random.normal(k, shape)).astype(jnp.float32)

    # Raw parameters in PyTorch layout.
    in_sizes = [output_dim] + [hidden_dim] * (n_layers - 1)
    raw = {"w_ih": [], "w_hh": [], "b_ih": [], "b_hh": []}
    for l in range(n_layers):
        raw["w_ih"].append(_init(ks[4 * l + 0], (4 * hidden_dim, in_sizes[l])))
        raw["w_hh"].append(_init(ks[4 * l + 1], (4 * hidden_dim, hidden_dim)))
        raw["b_ih"].append(_init(ks[4 * l + 2], (4 * hidden_dim,)))
        raw["b_hh"].append(_init(ks[4 * l + 3], (4 * hidden_dim,)))
    base = 4 * n_layers
    raw["w_fc"] = _init(ks[base + 0], (output_dim, hidden_dim))
    raw["b_fc"] = _init(ks[base + 1], (output_dim,))

    params = build_kernel_params(raw, hidden_dim, output_dim)

    x_seq = _init(ks[base + 2], (n_steps, batch, output_dim), scale=1.0)
    hidden = _init(ks[base + 3], (n_layers, batch, hidden_dim), scale=1.0)
    cell = _init(ks[base + 4], (n_layers, batch, hidden_dim), scale=1.0)

    # --- single step (module-parity API: Decoder.forward) ---
    pred1, h1, c1, alphas = decoder_forward(
        x_seq[0], hidden, cell, params, n_layers, output_dim)
    # --- T fused steps (amortized launch, VMEM-resident weights & state) ---
    pred_seq, hT, cT, _ = decoder_forward_seq(
        x_seq, hidden, cell, params, n_layers, output_dim)
    jax.block_until_ready((pred1, h1, c1, pred_seq, hT, cT))

    # Silent correctness checks against the raw-weight PyTorch-semantics reference.
    p_r1, h_r1, c_r1 = decoder_forward_ref(x_seq[:1], hidden, cell, raw, output_dim)
    np.testing.assert_allclose(np.asarray(pred1), np.asarray(p_r1[0]), rtol=1e-4, atol=1e-4)
    np.testing.assert_allclose(np.asarray(h1), np.asarray(h_r1), rtol=1e-4, atol=1e-4)
    np.testing.assert_allclose(np.asarray(c1), np.asarray(c_r1), rtol=1e-4, atol=1e-4)

    p_rT, h_rT, c_rT = decoder_forward_ref(x_seq, hidden, cell, raw, output_dim)
    np.testing.assert_allclose(np.asarray(pred_seq), np.asarray(p_rT), rtol=1e-4, atol=1e-4)
    np.testing.assert_allclose(np.asarray(hT), np.asarray(h_rT), rtol=1e-4, atol=1e-4)
    np.testing.assert_allclose(np.asarray(cT), np.asarray(c_rT), rtol=1e-4, atol=1e-4)

    assert alphas is None
    assert pred1.shape == (batch, output_dim)
    assert pred_seq.shape == (n_steps, batch, output_dim)

    print("KERNEL_OK")
</pallas_src>

<mosaic_0001>
module attributes {stable_mosaic.version = 11 : i64} {
  func.func @kernel(%arg0: memref<1x8x16xf32, #tpu.memory_space<vmem>>, %arg1: memref<2x8x32xf32, #tpu.memory_space<vmem>>, %arg2: memref<2x8x32xf32, #tpu.memory_space<vmem>>, %arg3: memref<16x128xf32, #tpu.memory_space<vmem>>, %arg4: memref<32x128xf32, #tpu.memory_space<vmem>>, %arg5: memref<32x128xf32, #tpu.memory_space<vmem>>, %arg6: memref<32x128xf32, #tpu.memory_space<vmem>>, %arg7: memref<2x1x128xf32, #tpu.memory_space<vmem>>, %arg8: memref<1x128xf32, #tpu.memory_space<vmem>>, %arg9: memref<1x128xf32, #tpu.memory_space<vmem>>, %arg10: memref<32x128xf32, #tpu.memory_space<vmem>>, %arg11: memref<1x128xf32, #tpu.memory_space<vmem>>, %arg12: memref<1x8x128xf32, #tpu.memory_space<vmem>>, %arg13: memref<2x8x32xf32, #tpu.memory_space<vmem>>, %arg14: memref<2x8x32xf32, #tpu.memory_space<vmem>>) attributes {dimension_semantics = [], scalar_prefetch = 0 : i64, scratch_operands = 0 : i64, tpu.core_type = #tpu.core_type<tc>} {
    %c0 = arith.constant 0 : index
    %c0_0 = arith.constant 0 : index
    %c0_1 = arith.constant 0 : index
    %0 = vector.load %arg1[%c0, %c0_0, %c0_1] : memref<2x8x32xf32, #tpu.memory_space<vmem>>, vector<2x8x32xf32>
    %c0_2 = arith.constant 0 : index
    %c0_3 = arith.constant 0 : index
    %c0_4 = arith.constant 0 : index
    %1 = vector.load %arg13[%c0_2, %c0_3, %c0_4] : memref<2x8x32xf32, #tpu.memory_space<vmem>>, vector<2x8x32xf32>
    tpu.vector_store %arg13[%c0_2, %c0_3, %c0_4], %0 {strides = array<i32>} : memref<2x8x32xf32, #tpu.memory_space<vmem>>, vector<2x8x32xf32>,
    %c0_5 = arith.constant 0 : index
    %c0_6 = arith.constant 0 : index
    %c0_7 = arith.constant 0 : index
    %2 = vector.load %arg2[%c0_5, %c0_6, %c0_7] : memref<2x8x32xf32, #tpu.memory_space<vmem>>, vector<2x8x32xf32>
    %c0_8 = arith.constant 0 : index
    %c0_9 = arith.constant 0 : index
    %c0_10 = arith.constant 0 : index
    %3 = vector.load %arg14[%c0_8, %c0_9, %c0_10] : memref<2x8x32xf32, #tpu.memory_space<vmem>>, vector<2x8x32xf32>
    tpu.vector_store %arg14[%c0_8, %c0_9, %c0_10], %2 {strides = array<i32>} : memref<2x8x32xf32, #tpu.memory_space<vmem>>, vector<2x8x32xf32>,
    %c0_11 = arith.constant 0 : index
    %c0_12 = arith.constant 0 : index
    %4 = vector.load %arg8[%c0_11, %c0_12] : memref<1x128xf32, #tpu.memory_space<vmem>>, vector<1x128xf32>
    %5 = vector.shape_cast %4 : vector<1x128xf32> to vector<1x128xf32>
    %6 = vector.broadcast %5 : vector<1x128xf32> to vector<8x128xf32>
    %c0_13 = arith.constant 0 : index
    %c0_14 = arith.constant 0 : index
    %7 = vector.load %arg9[%c0_13, %c0_14] : memref<1x128xf32, #tpu.memory_space<vmem>>, vector<1x128xf32>
    %8 = vector.shape_cast %7 : vector<1x128xf32> to vector<1x128xf32>
    %9 = vector.broadcast %8 : vector<1x128xf32> to vector<8x128xf32>
    %c0_15 = arith.constant 0 : index
    %c0_16 = arith.constant 0 : index
    %10 = vector.load %arg11[%c0_15, %c0_16] : memref<1x128xf32, #tpu.memory_space<vmem>>, vector<1x128xf32>
    %11 = vector.shape_cast %10 : vector<1x128xf32> to vector<1x128xf32>
    %12 = vector.broadcast %11 : vector<1x128xf32> to vector<8x128xf32>
    %c0_17 = arith.constant 0 : index
    %c0_18 = arith.constant 0 : index
    %c0_19 = arith.constant 0 : index
    %13 = vector.load %arg7[%c0_17, %c0_18, %c0_19] : memref<2x1x128xf32, #tpu.memory_space<vmem>>, vector<1x1x128xf32>
    %14 = vector.shape_cast %13 : vector<1x1x128xf32> to vector<1x128xf32>
    %15 = vector.shape_cast %14 : vector<1x128xf32> to vector<1x128xf32>
    %16 = vector.broadcast %15 : vector<1x128xf32> to vector<8x128xf32>
    %c1 = arith.constant 1 : index
    %c0_20 = arith.constant 0 : index
    %c0_21 = arith.constant 0 : index
    %17 = vector.load %arg7[%c1, %c0_20, %c0_21] : memref<2x1x128xf32, #tpu.memory_space<vmem>>, vector<1x1x128xf32>
    %18 = vector.shape_cast %17 : vector<1x1x128xf32> to vector<1x128xf32>
    %19 = vector.shape_cast %18 : vector<1x128xf32> to vector<1x128xf32>
    %20 = vector.broadcast %19 : vector<1x128xf32> to vector<8x128xf32>
    %c0_i32 = arith.constant 0 : i32
    %c1_i32 = arith.constant 1 : i32
    %21 = arith.muli %c0_i32, %c1_i32 : i32
    %c0_i32_22 = arith.constant 0 : i32
    %22 = arith.addi %c0_i32_22, %21 : i32
    %23 = arith.index_cast %22 : i32 to index
    %c0_23 = arith.constant 0 : index
    %c0_24 = arith.constant 0 : index
    %24 = vector.load %arg0[%23, %c0_23, %c0_24] : memref<1x8x16xf32, #tpu.memory_space<vmem>>, vector<1x8x16xf32>
    %25 = vector.shape_cast %24 : vector<1x8x16xf32> to vector<8x16xf32>
    %c0_25 = arith.constant 0 : index
    %c0_26 = arith.constant 0 : index
    %c0_27 = arith.constant 0 : index
    %26 = vector.load %arg13[%c0_25, %c0_26, %c0_27] : memref<2x8x32xf32, #tpu.memory_space<vmem>>, vector<1x8x32xf32>
    %27 = vector.shape_cast %26 : vector<1x8x32xf32> to vector<8x32xf32>
    %c0_28 = arith.constant 0 : index
    %c0_29 = arith.constant 0 : index
    %c0_30 = arith.constant 0 : index
    %28 = vector.load %arg14[%c0_28, %c0_29, %c0_30] : memref<2x8x32xf32, #tpu.memory_space<vmem>>, vector<1x8x32xf32>
    %29 = vector.shape_cast %28 : vector<1x8x32xf32> to vector<8x32xf32>
    %c0_31 = arith.constant 0 : index
    %c0_32 = arith.constant 0 : index
    %30 = vector.load %arg3[%c0_31, %c0_32] : memref<16x128xf32, #tpu.memory_space<vmem>>, vector<16x128xf32>
    %cst = arith.constant dense<0.000000e+00> : vector<8x128xf32>
    %31 = tpu.matmul %25, %30, %cst {dimension_numbers = #tpu.dot_dimension_numbers<[1], [0], [0], [1], [0, 0, 1, 1], [], []>} : vector<8x16xf32>, vector<16x128xf32>, vector<8x128xf32> -> vector<8x128xf32>
    %c0_33 = arith.constant 0 : index
    %c0_34 = arith.constant 0 : index
    %32 = vector.load %arg5[%c0_33, %c0_34] : memref<32x128xf32, #tpu.memory_space<vmem>>, vector<32x128xf32>
    %cst_35 = arith.constant dense<0.000000e+00> : vector<8x128xf32>
    %33 = tpu.matmul %27, %32, %cst_35 {dimension_numbers = #tpu.dot_dimension_numbers<[1], [0], [0], [1], [0, 0, 1, 1], [], []>} : vector<8x32xf32>, vector<32x128xf32>, vector<8x128xf32> -> vector<8x128xf32>
    %34 = arith.addf %31, %33 : vector<8x128xf32>
    %35 = arith.addf %34, %16 : vector<8x128xf32>
    %36 = math.tanh %35 : vector<8x128xf32>
    %37 = arith.mulf %36, %6 : vector<8x128xf32>
    %38 = arith.addf %37, %9 : vector<8x128xf32>
    %39 = vector.extract_strided_slice %38 {offsets = [0, 0], sizes = [8, 32], strides = [1, 1]} : vector<8x128xf32> to vector<8x32xf32>
    %40 = vector.extract_strided_slice %38 {offsets = [0, 32], sizes = [8, 32], strides = [1, 1]} : vector<8x128xf32> to vector<8x32xf32>
    %41 = vector.extract_strided_slice %38 {offsets = [0, 64], sizes = [8, 32], strides = [1, 1]} : vector<8x128xf32> to vector<8x32xf32>
    %42 = vector.extract_strided_slice %38 {offsets = [0, 96], sizes = [8, 32], strides = [1, 1]} : vector<8x128xf32> to vector<8x32xf32>
    %43 = arith.mulf %40, %29 : vector<8x32xf32>
    %44 = arith.mulf %39, %41 : vector<8x32xf32>
    %45 = arith.addf %43, %44 : vector<8x32xf32>
    %46 = math.tanh %45 : vector<8x32xf32>
    %47 = arith.mulf %42, %46 : vector<8x32xf32>
    %c0_36 = arith.constant 0 : index
    %c0_37 = arith.constant 0 : index
    %c0_38 = arith.constant 0 : index
    %48 = vector.load %arg13[%c0_36, %c0_37, %c0_38] : memref<2x8x32xf32, #tpu.memory_space<vmem>>, vector<1x8x32xf32>
    %49 = vector.shape_cast %48 : vector<1x8x32xf32> to vector<8x32xf32>
    %50 = vector.shape_cast %47 : vector<8x32xf32> to vector<1x8x32xf32>
    tpu.vector_store %arg13[%c0_36, %c0_37, %c0_38], %50 {strides = array<i32>} : memref<2x8x32xf32, #tpu.memory_space<vmem>>, vector<1x8x32xf32>,
    %c0_39 = arith.constant 0 : index
    %c0_40 = arith.constant 0 : index
    %c0_41 = arith.constant 0 : index
    %51 = vector.load %arg14[%c0_39, %c0_40, %c0_41] : memref<2x8x32xf32, #tpu.memory_space<vmem>>, vector<1x8x32xf32>
    %52 = vector.shape_cast %51 : vector<1x8x32xf32> to vector<8x32xf32>
    %53 = vector.shape_cast %45 : vector<8x32xf32> to vector<1x8x32xf32>
    tpu.vector_store %arg14[%c0_39, %c0_40, %c0_41], %53 {strides = array<i32>} : memref<2x8x32xf32, #tpu.memory_space<vmem>>, vector<1x8x32xf32>,
    %c1_42 = arith.constant 1 : index
    %c0_43 = arith.constant 0 : index
    %c0_44 = arith.constant 0 : index
    %54 = vector.load %arg13[%c1_42, %c0_43, %c0_44] : memref<2x8x32xf32, #tpu.memory_space<vmem>>, vector<1x8x32xf32>
    %55 = vector.shape_cast %54 : vector<1x8x32xf32> to vector<8x32xf32>
    %c1_45 = arith.constant 1 : index
    %c0_46 = arith.constant 0 : index
    %c0_47 = arith.constant 0 : index
    %56 = vector.load %arg14[%c1_45, %c0_46, %c0_47] : memref<2x8x32xf32, #tpu.memory_space<vmem>>, vector<1x8x32xf32>
    %57 = vector.shape_cast %56 : vector<1x8x32xf32> to vector<8x32xf32>
    %c0_48 = arith.constant 0 : index
    %c0_49 = arith.constant 0 : index
    %58 = vector.load %arg4[%c0_48, %c0_49] : memref<32x128xf32, #tpu.memory_space<vmem>>, vector<32x128xf32>
    %cst_50 = arith.constant dense<0.000000e+00> : vector<8x128xf32>
    %59 = tpu.matmul %47, %58, %cst_50 {dimension_numbers = #tpu.dot_dimension_numbers<[1], [0], [0], [1], [0, 0, 1, 1], [], []>} : vector<8x32xf32>, vector<32x128xf32>, vector<8x128xf32> -> vector<8x128xf32>
    %c0_51 = arith.constant 0 : index
    %c0_52 = arith.constant 0 : index
    %60 = vector.load %arg6[%c0_51, %c0_52] : memref<32x128xf32, #tpu.memory_space<vmem>>, vector<32x128xf32>
    %cst_53 = arith.constant dense<0.000000e+00> : vector<8x128xf32>
    %61 = tpu.matmul %55, %60, %cst_53 {dimension_numbers = #tpu.dot_dimension_numbers<[1], [0], [0], [1], [0, 0, 1, 1], [], []>} : vector<8x32xf32>, vector<32x128xf32>, vector<8x128xf32> -> vector<8x128xf32>
    %62 = arith.addf %59, %61 : vector<8x128xf32>
    %63 = arith.addf %62, %20 : vector<8x128xf32>
    %64 = math.tanh %63 : vector<8x128xf32>
    %65 = arith.mulf %64, %6 : vector<8x128xf32>
    %66 = arith.addf %65, %9 : vector<8x128xf32>
    %67 = vector.extract_strided_slice %66 {offsets = [0, 0], sizes = [8, 32], strides = [1, 1]} : vector<8x128xf32> to vector<8x32xf32>
    %68 = vector.extract_strided_slice %66 {offsets = [0, 32], sizes = [8, 32], strides = [1, 1]} : vector<8x128xf32> to vector<8x32xf32>
    %69 = vector.extract_strided_slice %66 {offsets = [0, 64], sizes = [8, 32], strides = [1, 1]} : vector<8x128xf32> to vector<8x32xf32>
    %70 = vector.extract_strided_slice %66 {offsets = [0, 96], sizes = [8, 32], strides = [1, 1]} : vector<8x128xf32> to vector<8x32xf32>
    %71 = arith.mulf %68, %57 : vector<8x32xf32>
    %72 = arith.mulf %67, %69 : vector<8x32xf32>
    %73 = arith.addf %71, %72 : vector<8x32xf32>
    %74 = math.tanh %73 : vector<8x32xf32>
    %75 = arith.mulf %70, %74 : vector<8x32xf32>
    %c1_54 = arith.constant 1 : index
    %c0_55 = arith.constant 0 : index
    %c0_56 = arith.constant 0 : index
    %76 = vector.load %arg13[%c1_54, %c0_55, %c0_56] : memref<2x8x32xf32, #tpu.memory_space<vmem>>, vector<1x8x32xf32>
    %77 = vector.shape_cast %76 : vector<1x8x32xf32> to vector<8x32xf32>
    %78 = vector.shape_cast %75 : vector<8x32xf32> to vector<1x8x32xf32>
    tpu.vector_store %arg13[%c1_54, %c0_55, %c0_56], %78 {strides = array<i32>} : memref<2x8x32xf32, #tpu.memory_space<vmem>>, vector<1x8x32xf32>,
    %c1_57 = arith.constant 1 : index
    %c0_58 = arith.constant 0 : index
    %c0_59 = arith.constant 0 : index
    %79 = vector.load %arg14[%c1_57, %c0_58, %c0_59] : memref<2x8x32xf32, #tpu.memory_space<vmem>>, vector<1x8x32xf32>
    %80 = vector.shape_cast %79 : vector<1x8x32xf32> to vector<8x32xf32>
    %81 = vector.shape_cast %73 : vector<8x32xf32> to vector<1x8x32xf32>
    tpu.vector_store %arg14[%c1_57, %c0_58, %c0_59], %81 {strides = array<i32>} : memref<2x8x32xf32, #tpu.memory_space<vmem>>, vector<1x8x32xf32>,
    %c0_60 = arith.constant 0 : index
    %c0_61 = arith.constant 0 : index
    %82 = vector.load %arg10[%c0_60, %c0_61] : memref<32x128xf32, #tpu.memory_space<vmem>>, vector<32x128xf32>
    %cst_62 = arith.constant dense<0.000000e+00> : vector<8x128xf32>
    %83 = tpu.matmul %75, %82, %cst_62 {dimension_numbers = #tpu.dot_dimension_numbers<[1], [0], [0], [1], [0, 0, 1, 1], [], []>} : vector<8x32xf32>, vector<32x128xf32>, vector<8x128xf32> -> vector<8x128xf32>
    %84 = arith.addf %83, %12 : vector<8x128xf32>
    %85 = arith.index_cast %22 : i32 to index
    %c0_63 = arith.constant 0 : index
    %c0_64 = arith.constant 0 : index
    %86 = vector.load %arg12[%85, %c0_63, %c0_64] : memref<1x8x128xf32, #tpu.memory_space<vmem>>, vector<1x8x128xf32>
    %87 = vector.shape_cast %86 : vector<1x8x128xf32> to vector<8x128xf32>
    %88 = vector.shape_cast %84 : vector<8x128xf32> to vector<1x8x128xf32>
    tpu.vector_store %arg12[%85, %c0_63, %c0_64], %88 {strides = array<i32>} : memref<1x8x128xf32, #tpu.memory_space<vmem>>, vector<1x8x128xf32>,
    %c1_i32_65 = arith.constant 1 : i32
    return
  }
}

</mosaic_0001>

<llo_original>
// kernel: decoder_forward.1
$region0: #{decoder_forward.1}
  #allocation0 [shape = 'u32[]', space=smem, size = 0x4, offset = 0x4, fixed_abs, tag = 'smem constant byte address 0x4 - core index']
  #allocation1 [shape = 'u32[144,128]{1,0:T(1,128)}', space=vmem, size = 0x12000, scoped, tag = 'internal scratch']
  %s0 = inlined_call_operand.vmem [shape: f32[1,8,16], index: 0, kind: input, shape index: {}]
  %s1 = inlined_call_operand.vmem [shape: f32[2,8,32], index: 1, kind: input, shape index: {}, may-alias: {1,13}]
  %s2 = inlined_call_operand.vmem [shape: f32[2,8,32], index: 2, kind: input, shape index: {}, may-alias: {2,14}]
  %s3 = inlined_call_operand.hbm [shape: f32[16,128], index: 3, kind: input, shape index: {}]
  %s4 = inlined_call_operand.vmem [shape: f32[32,128], index: 4, kind: input, shape index: {}]
  %s5 = inlined_call_operand.hbm [shape: f32[32,128], index: 5, kind: input, shape index: {}]
  %s6 = inlined_call_operand.hbm [shape: f32[32,128], index: 6, kind: input, shape index: {}]
  %s7 = inlined_call_operand.vmem [shape: f32[2,1,128], index: 7, kind: input, shape index: {}]
  %s8 = inlined_call_operand.vmem [shape: f32[1,128], index: 8, kind: input, shape index: {}]
  %s9 = inlined_call_operand.vmem [shape: f32[1,128], index: 9, kind: input, shape index: {}]
  %s10 = inlined_call_operand.hbm [shape: f32[32,128], index: 10, kind: input, shape index: {}]
  %s11 = inlined_call_operand.hbm [shape: f32[1,128], index: 11, kind: input, shape index: {}]
  %s12 = inlined_call_operand.vmem [shape: f32[1,8,128], index: 12, kind: output, shape index: {0}]
  %s13 = inlined_call_operand.vmem [shape: f32[2,8,32], index: 13, kind: output, shape index: {1}, may-alias: {1,13}]
  %s14 = inlined_call_operand.vmem [shape: f32[2,8,32], index: 14, kind: output, shape index: {2}, may-alias: {2,14}]
  %15 = xla_tuple %s12, %s13, %s14
  %s16 = sld [smem:[#allocation0]]
  $region94: #{decoder_forward.1} parent=0
    _
  %s18 = ssub.s32 1, %s16
  %s19 = scalar_select 0, %s18, %s16
  $region1: #{decoder_forward.1} parent=0
    #allocation2 [shape = 'u8[8192]{0}', space=vmem, size = 0x2000, scoped, tag = 'input window, operand 3, single buffered']
    #allocation3 [shape = 's32[1]{0}', space=sflag, size = 0x4, scoped, tag = 'scoped memory for decoder_forward.1']
    #allocation4 [shape = 'u8[16384]{0}', space=vmem, size = 0x4000, scoped, tag = 'input window, operand 5, single buffered']
    #allocation5 [shape = 's32[1]{0}', space=sflag, size = 0x4, scoped, tag = 'scoped memory for decoder_forward.1']
    #allocation6 [shape = 'u8[16384]{0}', space=vmem, size = 0x4000, scoped, tag = 'input window, operand 6, single buffered']
    #allocation7 [shape = 'u8[16384]{0}', space=vmem, size = 0x4000, scoped, tag = 'input window, operand 10, single buffered']
    #allocation8 [shape = 's32[1]{0}', space=sflag, size = 0x4, scoped, tag = 'scoped memory for decoder_forward.1']
    #allocation9 [shape = 'u8[512]{0}', space=vmem, size = 0x400, scoped, tag = 'input window, operand 11, single buffered']
    %20 = vsyncpa [#allocation3], 0
    %21 = vsyncpa [#allocation5], 0
    %22 = vsyncpa [#allocation8], 0
    // Predicated region
    $region2: #{decoder_forward.1} parent=1 // pred_check
      _
    $region3: #{decoder_forward.1} parent=1 // pred_check_branch
      %24 = sbr.rel (0) target = $region5
    $region4: #{decoder_forward.1} parent=1 // pred_region
      _
    $region5: #{decoder_forward.1} parent=1 // pred_fallthru
      _
    // Predicated region
    $region6: #{decoder_forward.1} parent=1 // pred_check
      _
    $region7: #{decoder_forward.1} parent=1 // pred_check_branch
      %26 = sbr.rel (0) target = $region9
    $region8: #{decoder_forward.1} parent=1 // pred_region
      _
    $region9: #{decoder_forward.1} parent=1 // pred_fallthru
      _
    // Predicated region
    $region10: #{decoder_forward.1} parent=1 // pred_check
      _
    $region11: #{decoder_forward.1} parent=1 // pred_check_branch
      %28 = sbr.rel (0) target = $region13
    $region12: #{decoder_forward.1} parent=1 // pred_region
      _
    $region13: #{decoder_forward.1} parent=1 // pred_fallthru
      _
    // Predicated region
    $region14: #{decoder_forward.1} parent=1 // pred_check
      _
    $region15: #{decoder_forward.1} parent=1 // pred_check_branch
      %30 = sbr.rel (0) target = $region17
    $region16: #{decoder_forward.1} parent=1 // pred_region
      %s32 = ssub.s32 256, 256
      %33 = vsyncadd [#allocation3], %s32
      %s34 = sshll.u32 [#allocation2], 4
      %s35 = int_to_ptr.vmem [resolvable:$true] %s34
      %40 = dma.hbm_to_vmem [thread:$0]  %s3, 256, %s35, [#allocation3], 128, 128, 8
    $region17: #{decoder_forward.1} parent=1 // pred_fallthru
      _
    // Predicated region
    $region18: #{decoder_forward.1} parent=1 // pred_check
      _
    $region19: #{decoder_forward.1} parent=1 // pred_check_branch
      %42 = sbr.rel (0) target = $region21
    $region20: #{decoder_forward.1} parent=1 // pred_region
      _
    $region21: #{decoder_forward.1} parent=1 // pred_fallthru
      _
    // Predicated region
    $region22: #{decoder_forward.1} parent=1 // pred_check
      _
    $region23: #{decoder_forward.1} parent=1 // pred_check_branch
      %44 = sbr.rel (0) target = $region25
    $region24: #{decoder_forward.1} parent=1 // pred_region
      %s46 = ssub.s32 512, 512
      %47 = vsyncadd [#allocation5], %s46
      %s48 = sshll.u32 [#allocation4], 4
      %s49 = int_to_ptr.vmem [resolvable:$true] %s48
      %54 = dma.hbm_to_vmem [thread:$0]  %s5, 512, %s49, [#allocation5], 128, 128, 8
    $region25: #{decoder_forward.1} parent=1 // pred_fallthru
      _
    // Predicated region
    $region26: #{decoder_forward.1} parent=1 // pred_check
      _
    $region27: #{decoder_forward.1} parent=1 // pred_check_branch
      %56 = sbr.rel (0) target = $region29
    $region28: #{decoder_forward.1} parent=1 // pred_region
      %s58 = ssub.s32 512, 512
      %59 = vsyncadd [#allocation5], %s58
      %s60 = sshll.u32 [#allocation6], 4
      %s61 = int_to_ptr.vmem [resolvable:$true] %s60
      %66 = dma.hbm_to_vmem [thread:$0]  %s6, 512, %s61, [#allocation5], 128, 128, 8
    $region29: #{decoder_forward.1} parent=1 // pred_fallthru
      _
    // Predicated region
    $region30: #{decoder_forward.1} parent=1 // pred_check
      _
    $region31: #{decoder_forward.1} parent=1 // pred_check_branch
      %68 = sbr.rel (0) target = $region33
    $region32: #{decoder_forward.1} parent=1 // pred_region
      _
    $region33: #{decoder_forward.1} parent=1 // pred_fallthru
      _
    // Predicated region
    $region34: #{decoder_forward.1} parent=1 // pred_check
      _
    $region35: #{decoder_forward.1} parent=1 // pred_check_branch
      %70 = sbr.rel (0) target = $region37
    $region36: #{decoder_forward.1} parent=1 // pred_region
      _
    $region37: #{decoder_forward.1} parent=1 // pred_fallthru
      _
    // Predicated region
    $region38: #{decoder_forward.1} parent=1 // pred_check
      _
    $region39: #{decoder_forward.1} parent=1 // pred_check_branch
      %72 = sbr.rel (0) target = $region41
    $region40: #{decoder_forward.1} parent=1 // pred_region
      _
    $region41: #{decoder_forward.1} parent=1 // pred_fallthru
      _
    // Predicated region
    $region42: #{decoder_forward.1} parent=1 // pred_check
      _
    $region43: #{decoder_forward.1} parent=1 // pred_check_branch
      %74 = sbr.rel (0) target = $region45
    $region44: #{decoder_forward.1} parent=1 // pred_region
      %s76 = ssub.s32 512, 512
      %77 = vsyncadd [#allocation8], %s76
      %s78 = sshll.u32 [#allocation7], 4
      %s79 = int_to_ptr.vmem [resolvable:$true] %s78
      %84 = dma.hbm_to_vmem [thread:$0]  %s10, 512, %s79, [#allocation8], 128, 128, 8
    $region45: #{decoder_forward.1} parent=1 // pred_fallthru
      _
    // Predicated region
    $region46: #{decoder_forward.1} parent=1 // pred_check
      _
    $region47: #{decoder_forward.1} parent=1 // pred_check_branch
      %86 = sbr.rel (0) target = $region49
    $region48: #{decoder_forward.1} parent=1 // pred_region
      %s88 = ssub.s32 16, 16
      %89 = vsyncadd [#allocation8], %s88
      %s91 = sshll.u32 [#allocation9], 4
      %s92 = int_to_ptr.vmem [resolvable:$true] %s91
      %94 = dma.hbm_to_vmem [thread:$0]  %s11, 16, %s92, [#allocation8]
    $region49: #{decoder_forward.1} parent=1 // pred_fallthru
      _
    // Predicated region
    $region50: #{decoder_forward.1} parent=1 // pred_check
      _
    $region51: #{decoder_forward.1} parent=1 // pred_check_branch
      %96 = sbr.rel (0) target = $region53
    $region52: #{decoder_forward.1} parent=1 // pred_region
      %97 = dma.done [#allocation3], 256
    $region53: #{decoder_forward.1} parent=1 // pred_fallthru
      _
    // Predicated region
    $region54: #{decoder_forward.1} parent=1 // pred_check
      _
    $region55: #{decoder_forward.1} parent=1 // pred_check_branch
      %99 = sbr.rel (0) target = $region57
    $region56: #{decoder_forward.1} parent=1 // pred_region
      %100 = dma.done [#allocation5], 512
    $region57: #{decoder_forward.1} parent=1 // pred_fallthru
      _
    // Predicated region
    $region58: #{decoder_forward.1} parent=1 // pred_check
      _
    $region59: #{decoder_forward.1} parent=1 // pred_check_branch
      %102 = sbr.rel (0) target = $region61
    $region60: #{decoder_forward.1} parent=1 // pred_region
      %103 = dma.done [#allocation5], 512
    $region61: #{decoder_forward.1} parent=1 // pred_fallthru
      _
    // Predicated region
    $region62: #{decoder_forward.1} parent=1 // pred_check
      _
    $region63: #{decoder_forward.1} parent=1 // pred_check_branch
      %105 = sbr.rel (0) target = $region65
    $region64: #{decoder_forward.1} parent=1 // pred_region
      %106 = dma.done [#allocation8], 512
    $region65: #{decoder_forward.1} parent=1 // pred_fallthru
      _
    // Predicated region
    $region66: #{decoder_forward.1} parent=1 // pred_check
      _
    $region67: #{decoder_forward.1} parent=1 // pred_check_branch
      %108 = sbr.rel (0) target = $region69
    $region68: #{decoder_forward.1} parent=1 // pred_region
      %109 = dma.done [#allocation8], 16
    $region69: #{decoder_forward.1} parent=1 // pred_fallthru
      _
    %v110 = vld [vmem:[%s1] sm:$0xff]
    %v111 = vld [vmem:[%s1 + $0x8] sm:$0xff]
    %vm112 = vcmask 261120
    %113 = vst.msk [vmem:[%s13] sm:$0xff] %vm112, %v110
    %114 = vst.msk [vmem:[%s13 + $0x8] sm:$0xff] %vm112, %v111
    %v115 = vld [vmem:[%s2] sm:$0xff]
    %v116 = vld [vmem:[%s2 + $0x8] sm:$0xff]
    %117 = vst.msk [vmem:[%s14] sm:$0xff] %vm112, %v115
    %118 = vst.msk [vmem:[%s14 + $0x8] sm:$0xff] %vm112, %v116
    %v119 = vld [vmem:[%s8] sm:$0x1]
    %v121 = vlaneseq
    %v122 = vshrl.u32 %v121, 7
    %v123 = vsub.s32 0, %v122
    %v124 = vrot.slane %v119, %v123
    %v126 = vld [vmem:[%s9] sm:$0x1]
    %v128 = vlaneseq
    %v129 = vshrl.u32 %v128, 7
    %v130 = vsub.s32 0, %v129
    %v131 = vrot.slane %v126, %v130
    %v133 = vld [vmem:[#allocation9] sm:$0x1]
    %v135 = vlaneseq
    %v136 = vshrl.u32 %v135, 7
    %v137 = vsub.s32 0, %v136
    %v138 = vrot.slane %v133, %v137
    %v140 = vld [vmem:[%s7] sm:$0x1]
    %v142 = vlaneseq
    %v143 = vshrl.u32 %v142, 7
    %v144 = vsub.s32 0, %v143
    %v145 = vrot.slane %v140, %v144
    %s147 = scalar_lea.vmem %s7, 1
    %v148 = vld [vmem:[%s147] sm:$0x1]
    %v150 = vlaneseq
    %v151 = vshrl.u32 %v150, 7
    %v152 = vsub.s32 0, %v151
    %v153 = vrot.slane %v148, %v152
    %v155 = vld [vmem:[%s0] sm:$0xff]
    %v156 = vld [vmem:[%s13] sm:$0xff]
    %v157 = vld [vmem:[%s14] sm:$0xff]
    %v158 = vld [vmem:[#allocation2] sm:$0xff]
    %v159 = vld [vmem:[#allocation2 + $0x8] sm:$0xff]
    %v160 = vld [vmem:[#allocation4] sm:$0xff]
    %v161 = vld [vmem:[#allocation4 + $0x8] sm:$0xff]
    %v162 = vld [vmem:[#allocation4 + $0x10] sm:$0xff]
    %v163 = vld [vmem:[#allocation4 + $0x18] sm:$0xff]
    %v165 = vsel %vm112, %v156, 0
    %167 = vmatprep.subr.mxu0 0.0
    %168 = vmatpush1.msra.mxu0 0.0
    %169 = vmatprep.subr.mxu0 0.0
    %170 = vmatpush1.msra.mxu0 0.0
    %171 = vmatprep.subr.mxu0 0.0
    %172 = vmatpush1.msra.mxu0 0.0
    %173 = vmatprep.subr.mxu0 0.0
    %174 = vmatpush1.msra.mxu0 0.0
    %175 = vmatprep.subr.mxu0 0.0
    %176 = vmatpush1.msra.mxu0 0.0
    %177 = vmatprep.subr.mxu0 0.0
    %178 = vmatpush1.msra.mxu0 0.0
    %179 = vmatprep.subr.mxu0 0.0
    %180 = vmatpush1.msra.mxu0 0.0
    %181 = vmatprep.subr.mxu0 0.0
    %182 = vmatpush1.msra.mxu0 0.0
    %183 = vmatprep.subr.mxu0 0.0
    %184 = vmatpush1.msra.mxu0 0.0
    %185 = vmatprep.subr.mxu0 0.0
    %186 = vmatpush1.msra.mxu0 0.0
    %187 = vmatprep.subr.mxu0 0.0
    %188 = vmatpush1.msra.mxu0 0.0
    %189 = vmatprep.subr.mxu0 0.0
    %190 = vmatpush1.msra.mxu0 0.0
    %191 = vmatprep.subr.mxu0 0.0
    %192 = vmatpush1.msra.mxu0 %v163
    %193 = vmatprep.subr.mxu0 0.0
    %194 = vmatpush1.msra.mxu0 %v162
    %195 = vmatprep.subr.mxu0 0.0
    %196 = vmatpush1.msra.mxu0 %v161
    %197 = vmatprep.subr.mxu0 0.0
    %198 = vmatpush1.msra.mxu0 %v160
    %199 = vmatprep.subr.mxu0 0.0
    %200 = vmatpush2.msra.mxu0 0.0
    %201 = vmatprep.subr.mxu0 0.0
    %202 = vmatpush2.msra.mxu0 0.0
    %203 = vmatprep.subr.mxu0 0.0
    %204 = vmatpush2.msra.mxu0 0.0
    %205 = vmatprep.subr.mxu0 0.0
    %206 = vmatpush2.msra.mxu0 0.0
    %207 = vmatprep.subr.mxu0 0.0
    %208 = vmatpush2.msra.mxu0 0.0
    %209 = vmatprep.subr.mxu0 0.0
    %210 = vmatpush2.msra.mxu0 0.0
    %211 = vmatprep.subr.mxu0 0.0
    %212 = vmatpush2.msra.mxu0 0.0
    %213 = vmatprep.subr.mxu0 0.0
    %214 = vmatpush2.msra.mxu0 0.0
    %215 = vmatprep.subr.mxu0 0.0
    %216 = vmatpush2.msra.mxu0 0.0
    %217 = vmatprep.subr.mxu0 0.0
    %218 = vmatpush2.msra.mxu0 0.0
    %219 = vmatprep.subr.mxu0 0.0
    %220 = vmatpush2.msra.mxu0 0.0
    %221 = vmatprep.subr.mxu0 0.0
    %222 = vmatpush2.msra.mxu0 0.0
    %223 = vmatprep.subr.mxu0 0.0
    %224 = vmatpush2.msra.mxu0 0.0
    %225 = vmatprep.subr.mxu0 0.0
    %226 = vmatpush2.msra.mxu0 0.0
    %227 = vmatprep.subr.mxu0 0.0
    %228 = vmatpush2.msra.mxu0 0.0
    %229 = vmatprep.subr.mxu0 0.0
    %230 = vmatpush2.msra.mxu0 0.0
    %231 = vmatprep.mubr.f32.mxu0 0.0
    %232 = vmatmul.mubr.f32.gmra.mxu0 %v165
    %v233 = vpop.f32.mrf.mxu0
    %v234 = vadd.f32 0.0, %v233
    %v235 = vpop.f32.mrf.mxu0
    %236 = vdwg.mxu0
    %vm237 = vcmask 130048
    %v239 = vsel %vm237, %v155, 0
    %241 = vmatprep.subr.mxu0 0.0
    %242 = vmatpush1.msra.mxu0 0.0
    %243 = vmatprep.subr.mxu0 0.0
    %244 = vmatpush1.msra.mxu0 0.0
    %245 = vmatprep.subr.mxu0 0.0
    %246 = vmatpush1.msra.mxu0 0.0
    %247 = vmatprep.subr.mxu0 0.0
    %248 = vmatpush1.msra.mxu0 0.0
    %249 = vmatprep.subr.mxu0 0.0
    %250 = vmatpush1.msra.mxu0 0.0
    %251 = vmatprep.subr.mxu0 0.0
    %252 = vmatpush1.msra.mxu0 0.0
    %253 = vmatprep.subr.mxu0 0.0
    %254 = vmatpush1.msra.mxu0 0.0
    %255 = vmatprep.subr.mxu0 0.0
    %256 = vmatpush1.msra.mxu0 0.0
    %257 = vmatprep.subr.mxu0 0.0
    %258 = vmatpush1.msra.mxu0 0.0
    %259 = vmatprep.subr.mxu0 0.0
    %260 = vmatpush1.msra.mxu0 0.0
    %261 = vmatprep.subr.mxu0 0.0
    %262 = vmatpush1.msra.mxu0 0.0
    %263 = vmatprep.subr.mxu0 0.0
    %264 = vmatpush1.msra.mxu0 0.0
    %265 = vmatprep.subr.mxu0 0.0
    %266 = vmatpush1.msra.mxu0 0.0
    %267 = vmatprep.subr.mxu0 0.0
    %268 = vmatpush1.msra.mxu0 0.0
    %269 = vmatprep.subr.mxu0 0.0
    %270 = vmatpush1.msra.mxu0 %v159
    %271 = vmatprep.subr.mxu0 0.0
    %272 = vmatpush1.msra.mxu0 %v158
    %273 = vmatprep.subr.mxu0 0.0
    %274 = vmatpush2.msra.mxu0 0.0
    %275 = vmatprep.subr.mxu0 0.0
    %276 = vmatpush2.msra.mxu0 0.0
    %277 = vmatprep.subr.mxu0 0.0
    %278 = vmatpush2.msra.mxu0 0.0
    %279 = vmatprep.subr.mxu0 0.0
    %280 = vmatpush2.msra.mxu0 0.0
    %281 = vmatprep.subr.mxu0 0.0
    %282 = vmatpush2.msra.mxu0 0.0
    %283 = vmatprep.subr.mxu0 0.0
    %284 = vmatpush2.msra.mxu0 0.0
    %285 = vmatprep.subr.mxu0 0.0
    %286 = vmatpush2.msra.mxu0 0.0
    %287 = vmatprep.subr.mxu0 0.0
    %288 = vmatpush2.msra.mxu0 0.0
    %289 = vmatprep.subr.mxu0 0.0
    %290 = vmatpush2.msra.mxu0 0.0
    %291 = vmatprep.subr.mxu0 0.0
    %292 = vmatpush2.msra.mxu0 0.0
    %293 = vmatprep.subr.mxu0 0.0
    %294 = vmatpush2.msra.mxu0 0.0
    %295 = vmatprep.subr.mxu0 0.0
    %296 = vmatpush2.msra.mxu0 0.0
    %297 = vmatprep.subr.mxu0 0.0
    %298 = vmatpush2.msra.mxu0 0.0
    %299 = vmatprep.subr.mxu0 0.0
    %300 = vmatpush2.msra.mxu0 0.0
    %301 = vmatprep.subr.mxu0 0.0
    %302 = vmatpush2.msra.mxu0 0.0
    %303 = vmatprep.subr.mxu0 0.0
    %304 = vmatpush2.msra.mxu0 0.0
    %305 = vmatprep.mubr.f32.mxu0 0.0
    %306 = vmatmul.mubr.f32.gmra.mxu0 %v239
    %v307 = vpop.f32.mrf.mxu0
    %v308 = vadd.f32 %v234, %v307
    %v309 = vpop.f32.mrf.mxu0
    %310 = vdwg.mxu0
    %v311 = vadd.f32 %v308, %v145
    %v312 = vtanh.pop %v311
    %v313 = vmul.f32 %v312, %v124
    %v314 = vadd.f32 %v313, %v131
    %316 = vrot.lane.b32.xlu0 %v157, 32
    %v317 = vpop.permute.xlu0 %316
    %v319 = vmul.f32 %v314, %v317
    %321 = vrot.lane.b32.xlu0 %v314, 64
    %v322 = vpop.permute.xlu0 %321
    %v324 = vmul.f32 %v314, %v322
    %326 = vrot.lane.b32.xlu0 %v324, 32
    %v327 = vpop.permute.xlu0 %326
    %v329 = vadd.f32 %v319, %v327
    %v330 = vtanh.pop %v329
    %332 = vrot.lane.b32.xlu0 %v330, 64
    %v333 = vpop.permute.xlu0 %332
    %v335 = vmul.f32 %v314, %v333
    %337 = vrot.lane.b32.xlu0 %v335, 32
    %v338 = vpop.permute.xlu0 %337
    %340 = vst.msk [vmem:[%s13] sm:$0xff] %vm112, %v338
    %342 = vrot.lane.b32.xlu0 %v329, 96
    %v343 = vpop.permute.xlu0 %342
    %345 = vst.msk [vmem:[%s14] sm:$0xff] %vm112, %v343
    %s346 = scalar_lea.vmem %s13, 8
    %v347 = vld [vmem:[%s346] sm:$0xff]
    %s348 = scalar_lea.vmem %s14, 8
    %v349 = vld [vmem:[%s348] sm:$0xff]
    %v350 = vld [vmem:[%s4] sm:$0xff]
    %v351 = vld [vmem:[%s4 + $0x8] sm:$0xff]
    %v352 = vld [vmem:[%s4 + $0x10] sm:$0xff]
    %v353 = vld [vmem:[%s4 + $0x18] sm:$0xff]
    %v354 = vld [vmem:[#allocation6] sm:$0xff]
    %v355 = vld [vmem:[#allocation6 + $0x8] sm:$0xff]
    %v356 = vld [vmem:[#allocation6 + $0x10] sm:$0xff]
    %v357 = vld [vmem:[#allocation6 + $0x18] sm:$0xff]
    %v359 = vsel %vm112, %v347, 0
    %361 = vmatprep.subr.mxu0 0.0
    %362 = vmatpush1.msra.mxu0 0.0
    %363 = vmatprep.subr.mxu0 0.0
    %364 = vmatpush1.msra.mxu0 0.0
    %365 = vmatprep.subr.mxu0 0.0
    %366 = vmatpush1.msra.mxu0 0.0
    %367 = vmatprep.subr.mxu0 0.0
    %368 = vmatpush1.msra.mxu0 0.0
    %369 = vmatprep.subr.mxu0 0.0
    %370 = vmatpush1.msra.mxu0 0.0
    %371 = vmatprep.subr.mxu0 0.0
    %372 = vmatpush1.msra.mxu0 0.0
    %373 = vmatprep.subr.mxu0 0.0
    %374 = vmatpush1.msra.mxu0 0.0
    %375 = vmatprep.subr.mxu0 0.0
    %376 = vmatpush1.msra.mxu0 0.0
    %377 = vmatprep.subr.mxu0 0.0
    %378 = vmatpush1.msra.mxu0 0.0
    %379 = vmatprep.subr.mxu0 0.0
    %380 = vmatpush1.msra.mxu0 0.0
    %381 = vmatprep.subr.mxu0 0.0
    %382 = vmatpush1.msra.mxu0 0.0
    %383 = vmatprep.subr.mxu0 0.0
    %384 = vmatpush1.msra.mxu0 0.0
    %385 = vmatprep.subr.mxu0 0.0
    %386 = vmatpush1.msra.mxu0 %v357
    %387 = vmatprep.subr.mxu0 0.0
    %388 = vmatpush1.msra.mxu0 %v356
    %389 = vmatprep.subr.mxu0 0.0
    %390 = vmatpush1.msra.mxu0 %v355
    %391 = vmatprep.subr.mxu0 0.0
    %392 = vmatpush1.msra.mxu0 %v354
    %393 = vmatprep.subr.mxu0 0.0
    %394 = vmatpush2.msra.mxu0 0.0
    %395 = vmatprep.subr.mxu0 0.0
    %396 = vmatpush2.msra.mxu0 0.0
    %397 = vmatprep.subr.mxu0 0.0
    %398 = vmatpush2.msra.mxu0 0.0
    %399 = vmatprep.subr.mxu0 0.0
    %400 = vmatpush2.msra.mxu0 0.0
    %401 = vmatprep.subr.mxu0 0.0
    %402 = vmatpush2.msra.mxu0 0.0
    %403 = vmatprep.subr.mxu0 0.0
    %404 = vmatpush2.msra.mxu0 0.0
    %405 = vmatprep.subr.mxu0 0.0
    %406 = vmatpush2.msra.mxu0 0.0
    %407 = vmatprep.subr.mxu0 0.0
    %408 = vmatpush2.msra.mxu0 0.0
    %409 = vmatprep.subr.mxu0 0.0
    %410 = vmatpush2.msra.mxu0 0.0
    %411 = vmatprep.subr.mxu0 0.0
    %412 = vmatpush2.msra.mxu0 0.0
    %413 = vmatprep.subr.mxu0 0.0
    %414 = vmatpush2.msra.mxu0 0.0
    %415 = vmatprep.subr.mxu0 0.0
    %416 = vmatpush2.msra.mxu0 0.0
    %417 = vmatprep.subr.mxu0 0.0
    %418 = vmatpush2.msra.mxu0 0.0
    %419 = vmatprep.subr.mxu0 0.0
    %420 = vmatpush2.msra.mxu0 0.0
    %421 = vmatprep.subr.mxu0 0.0
    %422 = vmatpush2.msra.mxu0 0.0
    %423 = vmatprep.subr.mxu0 0.0
    %424 = vmatpush2.msra.mxu0 0.0
    %425 = vmatprep.mubr.f32.mxu0 0.0
    %426 = vmatmul.mubr.f32.gmra.mxu0 %v359
    %v427 = vpop.f32.mrf.mxu0
    %v428 = vadd.f32 0.0, %v427
    %v429 = vpop.f32.mrf.mxu0
    %430 = vdwg.mxu0
    %v431 = vsel %vm112, %v338, 0
    %433 = vmatprep.subr.mxu0 0.0
    %434 = vmatpush1.msra.mxu0 0.0
    %435 = vmatprep.subr.mxu0 0.0
    %436 = vmatpush1.msra.mxu0 0.0
    %437 = vmatprep.subr.mxu0 0.0
    %438 = vmatpush1.msra.mxu0 0.0
    %439 = vmatprep.subr.mxu0 0.0
    %440 = vmatpush1.msra.mxu0 0.0
    %441 = vmatprep.subr.mxu0 0.0
    %442 = vmatpush1.msra.mxu0 0.0
    %443 = vmatprep.subr.mxu0 0.0
    %444 = vmatpush1.msra.mxu0 0.0
    %445 = vmatprep.subr.mxu0 0.0
    %446 = vmatpush1.msra.mxu0 0.0
    %447 = vmatprep.subr.mxu0 0.0
    %448 = vmatpush1.msra.mxu0 0.0
    %449 = vmatprep.subr.mxu0 0.0
    %450 = vmatpush1.msra.mxu0 0.0
    %451 = vmatprep.subr.mxu0 0.0
    %452 = vmatpush1.msra.mxu0 0.0
    %453 = vmatprep.subr.mxu0 0.0
    %454 = vmatpush1.msra.mxu0 0.0
    %455 = vmatprep.subr.mxu0 0.0
    %456 = vmatpush1.msra.mxu0 0.0
    %457 = vmatprep.subr.mxu0 0.0
    %458 = vmatpush1.msra.mxu0 %v353
    %459 = vmatprep.subr.mxu0 0.0
    %460 = vmatpush1.msra.mxu0 %v352
    %461 = vmatprep.subr.mxu0 0.0
    %462 = vmatpush1.msra.mxu0 %v351
    %463 = vmatprep.subr.mxu0 0.0
    %464 = vmatpush1.msra.mxu0 %v350
    %465 = vmatprep.subr.mxu0 0.0
    %466 = vmatpush2.msra.mxu0 0.0
    %467 = vmatprep.subr.mxu0 0.0
    %468 = vmatpush2.msra.mxu0 0.0
    %469 = vmatprep.subr.mxu0 0.0
    %470 = vmatpush2.msra.mxu0 0.0
    %471 = vmatprep.subr.mxu0 0.0
    %472 = vmatpush2.msra.mxu0 0.0
    %473 = vmatprep.subr.mxu0 0.0
    %474 = vmatpush2.msra.mxu0 0.0
    %475 = vmatprep.subr.mxu0 0.0
    %476 = vmatpush2.msra.mxu0 0.0
    %477 = vmatprep.subr.mxu0 0.0
    %478 = vmatpush2.msra.mxu0 0.0
    %479 = vmatprep.subr.mxu0 0.0
    %480 = vmatpush2.msra.mxu0 0.0
    %481 = vmatprep.subr.mxu0 0.0
    %482 = vmatpush2.msra.mxu0 0.0
    %483 = vmatprep.subr.mxu0 0.0
    %484 = vmatpush2.msra.mxu0 0.0
    %485 = vmatprep.subr.mxu0 0.0
    %486 = vmatpush2.msra.mxu0 0.0
    %487 = vmatprep.subr.mxu0 0.0
    %488 = vmatpush2.msra.mxu0 0.0
    %489 = vmatprep.subr.mxu0 0.0
    %490 = vmatpush2.msra.mxu0 0.0
    %491 = vmatprep.subr.mxu0 0.0
    %492 = vmatpush2.msra.mxu0 0.0
    %493 = vmatprep.subr.mxu0 0.0
    %494 = vmatpush2.msra.mxu0 0.0
    %495 = vmatprep.subr.mxu0 0.0
    %496 = vmatpush2.msra.mxu0 0.0
    %497 = vmatprep.mubr.f32.mxu0 0.0
    %498 = vmatmul.mubr.f32.gmra.mxu0 %v431
    %v499 = vpop.f32.mrf.mxu0
    %v500 = vadd.f32 %v428, %v499
    %v501 = vpop.f32.mrf.mxu0
    %502 = vdwg.mxu0
    %v503 = vadd.f32 %v500, %v153
    %v504 = vtanh.pop %v503
    %v505 = vmul.f32 %v504, %v124
    %v506 = vadd.f32 %v505, %v131
    %508 = vrot.lane.b32.xlu0 %v349, 32
    %v509 = vpop.permute.xlu0 %508
    %v511 = vmul.f32 %v506, %v509
    %513 = vrot.lane.b32.xlu0 %v506, 64
    %v514 = vpop.permute.xlu0 %513
    %v516 = vmul.f32 %v506, %v514
    %518 = vrot.lane.b32.xlu0 %v516, 32
    %v519 = vpop.permute.xlu0 %518
    %v521 = vadd.f32 %v511, %v519
    %v522 = vtanh.pop %v521
    %524 = vrot.lane.b32.xlu0 %v522, 64
    %v525 = vpop.permute.xlu0 %524
    %v527 = vmul.f32 %v506, %v525
    %529 = vrot.lane.b32.xlu0 %v527, 32
    %v530 = vpop.permute.xlu0 %529
    %532 = vst.msk [vmem:[%s346] sm:$0xff] %vm112, %v530
    %534 = vrot.lane.b32.xlu0 %v521, 96
    %v535 = vpop.permute.xlu0 %534
    %537 = vst.msk [vmem:[%s348] sm:$0xff] %vm112, %v535
    %v538 = vld [vmem:[#allocation7] sm:$0xff]
    %v539 = vld [vmem:[#allocation7 + $0x8] sm:$0xff]
    %v540 = vld [vmem:[#allocation7 + $0x10] sm:$0xff]
    %v541 = vld [vmem:[#allocation7 + $0x18] sm:$0xff]
    %v542 = vsel %vm112, %v530, 0
    %544 = vmatprep.subr.mxu0 0.0
    %545 = vmatpush1.msra.mxu0 0.0
    %546 = vmatprep.subr.mxu0 0.0
    %547 = vmatpush1.msra.mxu0 0.0
    %548 = vmatprep.subr.mxu0 0.0
    %549 = vmatpush1.msra.mxu0 0.0
    %550 = vmatprep.subr.mxu0 0.0
    %551 = vmatpush1.msra.mxu0 0.0
    %552 = vmatprep.subr.mxu0 0.0
    %553 = vmatpush1.msra.mxu0 0.0
    %554 = vmatprep.subr.mxu0 0.0
    %555 = vmatpush1.msra.mxu0 0.0
    %556 = vmatprep.subr.mxu0 0.0
    %557 = vmatpush1.msra.mxu0 0.0
    %558 = vmatprep.subr.mxu0 0.0
    %559 = vmatpush1.msra.mxu0 0.0
    %560 = vmatprep.subr.mxu0 0.0
    %561 = vmatpush1.msra.mxu0 0.0
    %562 = vmatprep.subr.mxu0 0.0
    %563 = vmatpush1.msra.mxu0 0.0
    %564 = vmatprep.subr.mxu0 0.0
    %565 = vmatpush1.msra.mxu0 0.0
    %566 = vmatprep.subr.mxu0 0.0
    %567 = vmatpush1.msra.mxu0 0.0
    %568 = vmatprep.subr.mxu0 0.0
    %569 = vmatpush1.msra.mxu0 %v541
    %570 = vmatprep.subr.mxu0 0.0
    %571 = vmatpush1.msra.mxu0 %v540
    %572 = vmatprep.subr.mxu0 0.0
    %573 = vmatpush1.msra.mxu0 %v539
    %574 = vmatprep.subr.mxu0 0.0
    %575 = vmatpush1.msra.mxu0 %v538
    %576 = vmatprep.subr.mxu0 0.0
    %577 = vmatpush2.msra.mxu0 0.0
    %578 = vmatprep.subr.mxu0 0.0
    %579 = vmatpush2.msra.mxu0 0.0
    %580 = vmatprep.subr.mxu0 0.0
    %581 = vmatpush2.msra.mxu0 0.0
    %582 = vmatprep.subr.mxu0 0.0
    %583 = vmatpush2.msra.mxu0 0.0
    %584 = vmatprep.subr.mxu0 0.0
    %585 = vmatpush2.msra.mxu0 0.0
    %586 = vmatprep.subr.mxu0 0.0
    %587 = vmatpush2.msra.mxu0 0.0
    %588 = vmatprep.subr.mxu0 0.0
    %589 = vmatpush2.msra.mxu0 0.0
    %590 = vmatprep.subr.mxu0 0.0
    %591 = vmatpush2.msra.mxu0 0.0
    %592 = vmatprep.subr.mxu0 0.0
    %593 = vmatpush2.msra.mxu0 0.0
    %594 = vmatprep.subr.mxu0 0.0
    %595 = vmatpush2.msra.mxu0 0.0
    %596 = vmatprep.subr.mxu0 0.0
    %597 = vmatpush2.msra.mxu0 0.0
    %598 = vmatprep.subr.mxu0 0.0
    %599 = vmatpush2.msra.mxu0 0.0
    %600 = vmatprep.subr.mxu0 0.0
    %601 = vmatpush2.msra.mxu0 0.0
    %602 = vmatprep.subr.mxu0 0.0
    %603 = vmatpush2.msra.mxu0 0.0
    %604 = vmatprep.subr.mxu0 0.0
    %605 = vmatpush2.msra.mxu0 0.0
    %606 = vmatprep.subr.mxu0 0.0
    %607 = vmatpush2.msra.mxu0 0.0
    %608 = vmatprep.mubr.f32.mxu0 0.0
    %609 = vmatmul.mubr.f32.gmra.mxu0 %v542
    %v610 = vpop.f32.mrf.mxu0
    %v611 = vadd.f32 %v138, %v610
    %v612 = vpop.f32.mrf.mxu0
    %613 = vdwg.mxu0
    %614 = vst [vmem:[%s12] sm:$0xff] %v611
    // Predicated region
    $region70: #{decoder_forward.1} parent=1 // pred_check
      _
    $region71: #{decoder_forward.1} parent=1 // pred_check_branch
      %616 = sbr.rel (0) target = $region73
    $region72: #{decoder_forward.1} parent=1 // pred_region
      _
    $region73: #{decoder_forward.1} parent=1 // pred_fallthru
      _
    // Predicated region
    $region74: #{decoder_forward.1} parent=1 // pred_check
      _
    $region75: #{decoder_forward.1} parent=1 // pred_check_branch
      %618 = sbr.rel (0) target = $region77
    $region76: #{decoder_forward.1} parent=1 // pred_region
      _
    $region77: #{decoder_forward.1} parent=1 // pred_fallthru
      _
    // Predicated region
    $region78: #{decoder_forward.1} parent=1 // pred_check
      _
    $region79: #{decoder_forward.1} parent=1 // pred_check_branch
      %620 = sbr.rel (0) target = $region81
    $region80: #{decoder_forward.1} parent=1 // pred_region
      _
    $region81: #{decoder_forward.1} parent=1 // pred_fallthru
      _
    // Predicated region
    $region82: #{decoder_forward.1} parent=1 // pred_check
      _
    $region83: #{decoder_forward.1} parent=1 // pred_check_branch
      %622 = sbr.rel (0) target = $region85
    $region84: #{decoder_forward.1} parent=1 // pred_region
      _
    $region85: #{decoder_forward.1} parent=1 // pred_fallthru
      _
    // Predicated region
    $region86: #{decoder_forward.1} parent=1 // pred_check
      _
    $region87: #{decoder_forward.1} parent=1 // pred_check_branch
      %624 = sbr.rel (0) target = $region89
    $region88: #{decoder_forward.1} parent=1 // pred_region
      _
    $region89: #{decoder_forward.1} parent=1 // pred_fallthru
      _
    // Predicated region
    $region90: #{decoder_forward.1} parent=1 // pred_check
      _
    $region91: #{decoder_forward.1} parent=1 // pred_check_branch
      %626 = sbr.rel (0) target = $region93
    $region92: #{decoder_forward.1} parent=1 // pred_region
      _
    $region93: #{decoder_forward.1} parent=1 // pred_fallthru
      _
    %627 = vsyncpa [#allocation3], 1
    %628 = vsyncpa [#allocation5], 1
    %629 = vsyncpa [#allocation8], 1

</llo_original>
